<compile_context>
chip_gen: v7x
topology: tpu7x:2x2x1
jax: 0.10.0
libtpu: 0.0.40
codegen_flags: <defaults>
</compile_context>

<pallas_src>
import functools

import jax
import jax.numpy as jnp
from jax import lax
from jax.experimental import pallas as pl
from jax.experimental.pallas import tpu as pltpu

MAX_BLOCK_ROWS = 2048            # 2048 rows x 512 lanes x 4 B = 4 MiB per f32 block
_LANE_CANDIDATES = (512, 256, 128)
_VMEM_LIMIT_BYTES = 40 << 20     # scoped-VMEM limit for both pallas_calls


def _grid_semantics():
    """CORE_PARALLEL shards the streaming grid across both TensorCores on v7x;
    plain PARALLEL elsewhere (v5e/v6e have a single TC per chip)."""
    try:
        kind = jax.devices()[0].device_kind.lower()
    except Exception:
        kind = ""
    if "v7" in kind:
        return (pltpu.CORE_PARALLEL,)
    return (pltpu.PARALLEL,)


def _slab_view(x):
    """Lane-dense 2-D view of `x`.

    Returns (slab, lanes, rows, padded).  On the hot path (size divisible by
    128) this is a pure metadata reshape -- no HBM copy.  Only when the flat
    size is not a multiple of 128 do we fall back to zero-padding the tail of
    the final 128-lane row (padded zeros contribute 0 to both reductions).
    """
    n = x.size
    flat = x.reshape(-1)
    for lanes in _LANE_CANDIDATES:
        if n % lanes == 0:
            return flat.reshape(n // lanes, lanes), lanes, n // lanes, False
    lanes = 128
    rows = -(-n // lanes)
    flat = jnp.pad(flat, (0, rows * lanes - n))
    return flat.reshape(rows, lanes), lanes, rows, True


def _block_rows(rows):
    """Largest legal row tile: the whole array if it fits one block (a block
    equal to the full dim is always layout-legal), else MAX_BLOCK_ROWS (a
    multiple of 8; the last block may be partial and is masked in-kernel)."""
    return rows if rows <= MAX_BLOCK_ROWS else MAX_BLOCK_ROWS


# ---------------------------------------------------------------------------
# Pass 1: per-tile partial sum of (x - t)^2  (independent tiles -> parallel)
# ---------------------------------------------------------------------------
def _sq_diff_partial_kernel(x_ref, t_ref, psum_ref, *, block_rows, valid_rows):
    d = x_ref[...].astype(jnp.float32) - t_ref[...].astype(jnp.float32)
    sq = d * d
    if valid_rows % block_rows != 0:
        # The last grid block overhangs the array; its out-of-bounds rows hold
        # unspecified values, so zero them before reducing (VPU work, hidden
        # under DMA).
        row = lax.broadcasted_iota(jnp.int32, sq.shape, 0)
        row = row + pl.program_id(0) * block_rows
        sq = jnp.where(row < valid_rows, sq, 0.0)
    psum_ref[0, 0] = jnp.sum(sq)


# ---------------------------------------------------------------------------
# Pass 2: loss = mse * mask (elementwise) + per-tile partial sum of loss
# ---------------------------------------------------------------------------
def _mask_scale_kernel(mse_ref, mask_ref, loss_ref, psum_ref, *, block_rows, valid_rows):
    m = mask_ref[...].astype(jnp.float32)
    l = mse_ref[0, 0] * m
    loss_ref[...] = l.astype(loss_ref.dtype)   # OOB rows of a partial block are dropped
    s = l
    if valid_rows % block_rows != 0:
        row = lax.broadcasted_iota(jnp.int32, l.shape, 0)
        row = row + pl.program_id(0) * block_rows
        s = jnp.where(row < valid_rows, l, 0.0)
    psum_ref[0, 0] = jnp.sum(s)


def mse_loss2_forward(inputs, targets, mask):
    """Returns (loss, normalized) matching MSELOSS2.forward's printed values."""
    assert inputs.shape == targets.shape
    if inputs.size == 0 or mask.size == 0:
        # Degenerate sizes: match the reference math without launching kernels.
        mse = jnp.mean((inputs.astype(jnp.float32) - targets.astype(jnp.float32)) ** 2)
        loss = (mse * mask.astype(jnp.float32)).astype(
            jnp.promote_types(inputs.dtype, mask.dtype))
        return loss, jnp.sum(loss) / jnp.float32(mask.shape[0] * 10)

    sem = _grid_semantics()

    # ---- pass 1: per-tile partial sums of squared differences ----
    x2, lanes_x, rows_x, _ = _slab_view(inputs)
    t2, _, _, _ = _slab_view(targets)
    br_x = _block_rows(rows_x)
    grid_x = pl.cdiv(rows_x, br_x)
    p1_bytes = int(inputs.size * inputs.dtype.itemsize
                   + targets.size * targets.dtype.itemsize + grid_x * 4)
    sq_partials = pl.pallas_call(
        functools.partial(_sq_diff_partial_kernel,
                          block_rows=br_x, valid_rows=rows_x),
        out_shape=jax.ShapeDtypeStruct((grid_x, 1), jnp.float32),
        grid=(grid_x,),
        in_specs=[
            pl.BlockSpec((br_x, lanes_x), lambda i: (i, 0)),
            pl.BlockSpec((br_x, lanes_x), lambda i: (i, 0)),
        ],
        out_specs=pl.BlockSpec((1, 1), lambda i: (i, 0),
                               memory_space=pltpu.MemorySpace.SMEM),
        compiler_params=pltpu.CompilerParams(
            dimension_semantics=sem, vmem_limit_bytes=_VMEM_LIMIT_BYTES),
        cost_estimate=pl.CostEstimate(flops=3 * inputs.size, transcendentals=0,
                                      bytes_accessed=p1_bytes),
    )(x2, t2)

    # nn.MSELoss() 'mean' reduction (tiny; fused by XLA).
    mse = (jnp.sum(sq_partials) / jnp.float32(inputs.size)).reshape(1, 1)

    # ---- pass 2: loss = mse * mask, plus per-tile partial sums of loss ----
    m2, lanes_m, rows_m, mask_padded = _slab_view(mask)
    br_m = _block_rows(rows_m)
    grid_m = pl.cdiv(rows_m, br_m)
    out_dtype = jnp.promote_types(inputs.dtype, mask.dtype)
    p2_bytes = int(mask.size * mask.dtype.itemsize
                   + rows_m * lanes_m * jnp.dtype(out_dtype).itemsize
                   + grid_m * 4 + 4)
    loss_slab, loss_partials = pl.pallas_call(
        functools.partial(_mask_scale_kernel,
                          block_rows=br_m, valid_rows=rows_m),
        out_shape=(
            jax.ShapeDtypeStruct((rows_m, lanes_m), out_dtype),
            jax.ShapeDtypeStruct((grid_m, 1), jnp.float32),
        ),
        grid=(grid_m,),
        in_specs=[
            pl.BlockSpec((1, 1), lambda i: (0, 0),
                         memory_space=pltpu.MemorySpace.SMEM),
            pl.BlockSpec((br_m, lanes_m), lambda i: (i, 0)),
        ],
        out_specs=(
            pl.BlockSpec((br_m, lanes_m), lambda i: (i, 0)),
            pl.BlockSpec((1, 1), lambda i: (i, 0),
                         memory_space=pltpu.MemorySpace.SMEM),
        ),
        compiler_params=pltpu.CompilerParams(
            dimension_semantics=sem, vmem_limit_bytes=_VMEM_LIMIT_BYTES),
        cost_estimate=pl.CostEstimate(flops=2 * mask.size, transcendentals=0,
                                      bytes_accessed=p2_bytes),
    )(mse, m2)

    if mask_padded:
        # Rare fallback path only (flat size not a multiple of 128).
        loss = loss_slab.reshape(-1)[:mask.size].reshape(mask.shape)
    else:
        loss = loss_slab.reshape(mask.shape)   # pure metadata reshape, no copy
    # Note: the sum is accumulated in f32 before the final downcast of `loss`,
    # which is at least as accurate as PyTorch's sum of the downcast tensor.
    normalized = jnp.sum(loss_partials) / jnp.float32(mask.shape[0] * 10)
    return loss, normalized


if __name__ == "__main__":
    key = jax.random.PRNGKey(0)
    k1, k2, k3 = jax.random.split(key, 3)

    # Small NCHW shapes consistent with the module's elementwise/broadcast use.
    inputs = jax.random.normal(k1, (2, 4, 16, 16), dtype=jnp.float32)
    targets = jax.random.normal(k2, (2, 4, 16, 16), dtype=jnp.float32)
    mask = jax.random.uniform(k3, (2, 4, 16, 16), dtype=jnp.float32)

    loss, normalized = mse_loss2_forward(inputs, targets, mask)
    loss = jax.block_until_ready(loss)
    normalized = jax.block_until_ready(normalized)

    # Mirror the module's prints.  (PyTorch forward returns None; values are
    # returned here so the caller can print them.)
    print(loss)
    print(normalized)

    # Pure-JAX reference check.
    ref_mse = jnp.mean((inputs - targets) ** 2)
    ref_loss = ref_mse * mask
    ref_norm = ref_loss.sum() / (mask.shape[0] * 10)
    assert jnp.allclose(loss, ref_loss, rtol=1e-5, atol=1e-5)
    assert jnp.allclose(normalized, ref_norm, rtol=1e-5, atol=1e-5)

    print("KERNEL_OK")
</pallas_src>

<mosaic_0001>
module attributes {stable_mosaic.version = 11 : i64} {
  func.func @_sq_diff_partial_kernel(%arg0: i32, %arg1: memref<4x512xf32, #tpu.memory_space<vmem>>, %arg2: memref<4x512xf32, #tpu.memory_space<vmem>>, %arg3: memref<1x1xf32, #tpu.memory_space<smem>>) attributes {dimension_semantics = [#tpu.dimension_semantics<parallel>], iteration_bounds = array<i64: 1>, scalar_prefetch = 0 : i64, scratch_operands = 0 : i64, tpu.core_type = #tpu.core_type<tc>, window_params = [{transform_indices = @transform_0, window_bounds = array<i64: 4, 512>}, {transform_indices = @transform_1, window_bounds = array<i64: 4, 512>}, {transform_indices = @transform_2, window_bounds = array<i64: 1, 1>}]} {
    %c0 = arith.constant 0 : index
    %c0_0 = arith.constant 0 : index
    %0 = vector.load %arg1[%c0, %c0_0] : memref<4x512xf32, #tpu.memory_space<vmem>>, vector<4x512xf32>
    %c0_1 = arith.constant 0 : index
    %c0_2 = arith.constant 0 : index
    %1 = vector.load %arg2[%c0_1, %c0_2] : memref<4x512xf32, #tpu.memory_space<vmem>>, vector<4x512xf32>
    %2 = arith.subf %0, %1 : vector<4x512xf32>
    %3 = arith.mulf %2, %2 : vector<4x512xf32>
    %4 = vector.shape_cast %3 : vector<4x512xf32> to vector<1x4x512xf32>
    %cst = arith.constant dense<0.000000e+00> : vector<1xf32>
    %5 = vector.multi_reduction <add>, %4, %cst [1, 2] : vector<1x4x512xf32> to vector<1xf32>
    %6 = vector.shape_cast %5 : vector<1xf32> to vector<1x1x1xf32>
    %7 = vector.extract %6[0, 0, 0] : f32 from vector<1x1x1xf32>
    %c0_3 = arith.constant 0 : index
    %c0_4 = arith.constant 0 : index
    %8 = memref.load %arg3[%c0_3, %c0_4] : memref<1x1xf32, #tpu.memory_space<smem>>
    memref.store %7, %arg3[%c0_3, %c0_4] : memref<1x1xf32, #tpu.memory_space<smem>>
    return
  }
  func.func @transform_0(%arg0: i32) -> (i32, i32) {
    %c0_i32 = arith.constant 0 : i32
    %c0_i32_0 = arith.constant 0 : i32
    return %arg0, %c0_i32 : i32, i32
  }
  func.func @transform_1(%arg0: i32) -> (i32, i32) {
    %c0_i32 = arith.constant 0 : i32
    %c0_i32_0 = arith.constant 0 : i32
    return %arg0, %c0_i32 : i32, i32
  }
  func.func @transform_2(%arg0: i32) -> (i32, i32) {
    %c0_i32 = arith.constant 0 : i32
    %c0_i32_0 = arith.constant 0 : i32
    return %arg0, %c0_i32 : i32, i32
  }
}

</mosaic_0001>

<llo_original>
// kernel: tpu_custom_call.1
$region0: #{tpu_custom_call.1}
  #allocation0 [shape = 'u32[]', space=smem, size = 0x4, offset = 0x4, fixed_abs, tag = 'smem constant byte address 0x4 - core index']
  #allocation1 [shape = 'u32[144,128]{1,0:T(1,128)}', space=vmem, size = 0x12000, scoped, tag = 'internal scratch']
  %s0 = inlined_call_operand.hbm [shape: f32[4,512], index: 0, kind: input, shape index: {}]
  %s1 = inlined_call_operand.hbm [shape: f32[4,512], index: 1, kind: input, shape index: {}]
  %s2 = inlined_call_operand.hbm [shape: f32[1,1], index: 2, kind: output, shape index: {}]
  %s3 = sld [smem:[#allocation0]]
  $region26: #{tpu_custom_call.1} parent=0
    _
  %s5 = ssub.s32 1, %s3
  %s6 = scalar_select 0, %s5, %s3
  $region1: #{tpu_custom_call.1} parent=0
    #allocation2 [shape = 'u8[8192]{0}', space=vmem, size = 0x2000, scoped, tag = 'input window, operand 0, single buffered']
    #allocation3 [shape = 's32[1]{0}', space=sflag, size = 0x4, scoped, tag = 'scoped memory for tpu_custom_call.1']
    #allocation4 [shape = 's32[1]{0}', space=sflag, size = 0x4, scoped, tag = 'scoped memory for tpu_custom_call.1']
    #allocation5 [shape = 'u8[8192]{0}', space=vmem, size = 0x2000, scoped, tag = 'input window, operand 1, single buffered']
    #allocation6 [shape = 's32[1]{0}', space=sflag, size = 0x4, scoped, tag = 'scoped memory for tpu_custom_call.1']
    #allocation7 [shape = 'u8[512]{0}', space=smem, size = 0x200, scoped, tag = 'output window, operand 0, single buffered']
    %7 = vsyncpa [#allocation3], 0
    %8 = vsyncpa [#allocation6], 0
    %9 = vsyncpa [#allocation4], 0
    // Predicated region
    $region2: #{tpu_custom_call.1} parent=1 // pred_check
      _
    $region3: #{tpu_custom_call.1} parent=1 // pred_check_branch
      %11 = sbr.rel (0) target = $region5
    $region4: #{tpu_custom_call.1} parent=1 // pred_region
      %s13 = ssub.s32 256, 256
      %14 = vsyncadd [#allocation3], %s13
      %s16 = sshll.u32 [#allocation2], 4
      %s17 = int_to_ptr.vmem [resolvable:$true] %s16
      %19 = dma.hbm_to_vmem [thread:$0]  %s0, 256, %s17, [#allocation3]
    $region5: #{tpu_custom_call.1} parent=1 // pred_fallthru
      _
    // Predicated region
    $region6: #{tpu_custom_call.1} parent=1 // pred_check
      _
    $region7: #{tpu_custom_call.1} parent=1 // pred_check_branch
      %21 = sbr.rel (0) target = $region9
    $region8: #{tpu_custom_call.1} parent=1 // pred_region
      %s23 = ssub.s32 256, 256
      %24 = vsyncadd [#allocation6], %s23
      %s26 = sshll.u32 [#allocation5], 4
      %s27 = int_to_ptr.vmem [resolvable:$true] %s26
      %29 = dma.hbm_to_vmem [thread:$0]  %s1, 256, %s27, [#allocation6]
    $region9: #{tpu_custom_call.1} parent=1 // pred_fallthru
      _
    // Predicated region
    $region10: #{tpu_custom_call.1} parent=1 // pred_check
      _
    $region11: #{tpu_custom_call.1} parent=1 // pred_check_branch
      %31 = sbr.rel (0) target = $region13
    $region12: #{tpu_custom_call.1} parent=1 // pred_region
      %32 = dma.done [#allocation3], 256
    $region13: #{tpu_custom_call.1} parent=1 // pred_fallthru
      _
    // Predicated region
    $region14: #{tpu_custom_call.1} parent=1 // pred_check
      _
    $region15: #{tpu_custom_call.1} parent=1 // pred_check_branch
      %34 = sbr.rel (0) target = $region17
    $region16: #{tpu_custom_call.1} parent=1 // pred_region
      %35 = dma.done [#allocation6], 256
    $region17: #{tpu_custom_call.1} parent=1 // pred_fallthru
      _
    %v36 = vld [vmem:[#allocation2] sm:$0xff]
    %v37 = vld [vmem:[#allocation2 + $0x8] sm:$0xff]
    %v38 = vld [vmem:[#allocation5] sm:$0xff]
    %v39 = vld [vmem:[#allocation5 + $0x8] sm:$0xff]
    %v40 = vsub.f32 %v36, %v38
    %v41 = vsub.f32 %v37, %v39
    %v42 = vmul.f32 %v40, %v40
    %v43 = vmul.f32 %v41, %v41
    %v46 = vcombine.high %v42, %v42
    %v47 = vcombine.high %v43, %v43
    %vm50 = vcmask 1043456
    %v51 = vsel %vm50, %v42, 0.0
    %v52 = vsel %vm50, %v46, 0.0
    %v53 = vadd.f32 %v51, %v52
    %v54 = vsel %vm50, %v43, 0.0
    %v55 = vadd.f32 %v53, %v54
    %v56 = vsel %vm50, %v47, 0.0
    %v57 = vadd.f32 %v55, %v56
    %58 = vadd.xlane.f32.xlu0 %v57
    %v59 = vpop.xlane.xlu0 %58
    %v60 = vrot.slane %v59, 4
    %v61 = vadd.f32 %v59, %v60
    %v62 = vrot.slane %v61, 2
    %v63 = vadd.f32 %v61, %v62
    %v64 = vrot.slane %v63, 1
    %v65 = vadd.f32 %v63, %v64
    %s66 = vtos %v65
    %s67 = scalar_lea.smem [#allocation7], 0
    %68 = sst [smem:[%s67]] %s66
    // Predicated region
    $region18: #{tpu_custom_call.1} parent=1 // pred_check
      _
    $region19: #{tpu_custom_call.1} parent=1 // pred_check_branch
      %70 = sbr.rel (0) target = $region21
    $region20: #{tpu_custom_call.1} parent=1 // pred_region
      %s72 = ssub.s32 16, 16
      %73 = vsyncadd [#allocation4], %s72
      %76 = dma.smem_to_hbm [#allocation7], 16, %s2, [#allocation4]
    $region21: #{tpu_custom_call.1} parent=1 // pred_fallthru
      _
    // Predicated region
    $region22: #{tpu_custom_call.1} parent=1 // pred_check
      _
    $region23: #{tpu_custom_call.1} parent=1 // pred_check_branch
      %78 = sbr.rel (0) target = $region25
    $region24: #{tpu_custom_call.1} parent=1 // pred_region
      %79 = dma.done [#allocation4], 16
    $region25: #{tpu_custom_call.1} parent=1 // pred_fallthru
      _
    %80 = sfence
    %81 = vsyncpa [#allocation3], 1
    %82 = vsyncpa [#allocation6], 1
    %83 = vsyncpa [#allocation4], 1

</llo_original>
